<compile_context>
chip_gen: v7x
topology: tpu7x:2x2x1
jax: 0.10.0
libtpu: 0.0.40
codegen_flags: <defaults>
</compile_context>

<pallas_src>
import math

import jax
import jax.numpy as jnp
from jax.experimental import pallas as pl
from jax.experimental.pallas import tpu as pltpu


_TARGET_BLOCK_BYTES = 512 * 1024  # per-buffer block budget (f32: 128K elements)


def _add_pe_kernel(x_ref, pe_ref, o_ref):
    # Hot path: one f32 add per element; single downcast at the store.
    o_ref[...] = (x_ref[...].astype(jnp.float32) + pe_ref[...]).astype(o_ref.dtype)


def _add_pe_dropout_kernel(x_ref, pe_ref, m_ref, o_ref):
    # m_ref holds the inverted-dropout mask already scaled by 1/(1-p).
    y = (x_ref[...].astype(jnp.float32) + pe_ref[...]) * m_ref[...]
    o_ref[...] = y.astype(o_ref.dtype)


def _pe_table(seq_len, d_model):
    """(1, seq_len*d_model) float32 PE table, identical to the PyTorch buffer."""
    pos = jnp.arange(seq_len, dtype=jnp.float32)[:, None]
    div_term = jnp.exp(
        jnp.arange(0, d_model, 2, dtype=jnp.float32)
        * (-math.log(10000.0) / d_model)
    )
    ang = pos * div_term  # (S, ceil(D/2)) -- sin/cos each evaluated on half the lanes
    pe = jnp.zeros((seq_len, d_model), jnp.float32)
    pe = pe.at[:, 0::2].set(jnp.sin(ang))
    pe = pe.at[:, 1::2].set(jnp.cos(ang[:, : d_model // 2]))
    return pe.reshape(1, seq_len * d_model)


def _pick_tiles(batch, flat, itemsize):
    """Choose (batch_tile, lane_tile) respecting the (8,128) constraint."""
    # Lane tile: multiple of 128 within the budget, or the whole (small) axis.
    max_lane = max(128, (_TARGET_BLOCK_BYTES // itemsize) // 128 * 128)
    tn = flat if flat <= max_lane else max_lane
    # Batch (sublane) tile: pack rows up to the budget; multiple of 8 or full B.
    rows_budget = max(1, _TARGET_BLOCK_BYTES // (tn * itemsize))
    if batch <= rows_budget or batch <= 8:
        tb = batch
    else:
        tb = max(8, (rows_budget // 8) * 8)
    return tb, tn


def positional_encoding(x, *, dropout_p=0.1, training=False, rng_key=None):
    """x: (B, S, D) float array.  Returns x + PE (inverted dropout if training)."""
    B, S, D = x.shape
    N = S * D
    itemsize = x.dtype.itemsize

    x2 = x.reshape(B, N)          # lane-dense slab (last dim = S*D)
    pe2 = _pe_table(S, D)         # (1, N) f32, computed once per call (not per batch)

    tb, tn = _pick_tiles(B, N, itemsize)
    # Batch axis innermost: PE block index (0, n) is constant across inner steps,
    # so its DMA is skipped while it stays resident in VMEM.
    grid = (pl.cdiv(N, tn), pl.cdiv(B, tb))

    x_spec = pl.BlockSpec((tb, tn), lambda n, b: (b, n))
    pe_spec = pl.BlockSpec((1, tn), lambda n, b: (0, n))
    out_spec = pl.BlockSpec((tb, tn), lambda n, b: (b, n))

    use_dropout = training and dropout_p > 0.0
    if use_dropout:
        if rng_key is None:
            rng_key = jax.random.PRNGKey(0)
        p = float(min(max(dropout_p, 0.0), 1.0))
        if p >= 1.0:
            mask = jnp.zeros((B, N), jnp.float32)
        else:
            keep = jax.random.bernoulli(rng_key, 1.0 - p, (B, N))
            mask = keep.astype(jnp.float32) * jnp.float32(1.0 / (1.0 - p))
        kernel = _add_pe_dropout_kernel
        in_specs = [x_spec, pe_spec, pl.BlockSpec((tb, tn), lambda n, b: (b, n))]
        args = (x2, pe2, mask)
    else:
        kernel = _add_pe_kernel
        in_specs = [x_spec, pe_spec]
        args = (x2, pe2)

    out2 = pl.pallas_call(
        kernel,
        out_shape=jax.ShapeDtypeStruct((B, N), x.dtype),
        grid=grid,
        in_specs=in_specs,
        out_specs=out_spec,
        compiler_params=pltpu.CompilerParams(
            dimension_semantics=("parallel", "parallel"),
            vmem_limit_bytes=32 * 1024 * 1024,
        ),
    )(*args)
    return out2.reshape(B, S, D)


def _reference(x):
    """Pure-JAX reference of the PyTorch forward (eval mode)."""
    B, S, D = x.shape
    pos = jnp.arange(S, dtype=jnp.float32)[:, None]
    div_term = jnp.exp(
        jnp.arange(0, D, 2, dtype=jnp.float32) * (-math.log(10000.0) / D)
    )
    pe = jnp.zeros((S, D), dtype=jnp.float32)
    pe = pe.at[:, 0::2].set(jnp.sin(pos * div_term))
    pe = pe.at[:, 1::2].set(jnp.cos(pos * div_term))
    return (x.astype(jnp.float32) + pe[None]).astype(x.dtype)


if __name__ == "__main__":
    B, S, D = 2, 8, 32  # batch, seq_len, d_model
    key = jax.random.PRNGKey(0)
    x = jax.random.normal(key, (B, S, D), dtype=jnp.float32)

    # Eval-mode forward (dropout identity) -- matches PyTorch module.eval().
    out = jax.block_until_ready(positional_encoding(x, dropout_p=0.1, training=False))
    ref = _reference(x)
    assert out.shape == (B, S, D)
    assert jnp.allclose(out, ref, atol=1e-5, rtol=1e-5), "mismatch vs reference"

    # Training (dropout) path -- mask comes from jax.random, so this runs on
    # both compiled TPU and interpret backends.
    out_tr = jax.block_until_ready(
        positional_encoding(x, dropout_p=0.1, training=True,
                            rng_key=jax.random.PRNGKey(42))
    )
    assert out_tr.shape == (B, S, D)
    assert bool(jnp.all(jnp.isfinite(out_tr)))

    print("KERNEL_OK")
</pallas_src>

<mosaic_0001>
module attributes {stable_mosaic.version = 11 : i64} {
  func.func @_add_pe_kernel(%arg0: i32, %arg1: i32, %arg2: memref<2x256xf32, #tpu.memory_space<vmem>>, %arg3: memref<1x256xf32, #tpu.memory_space<vmem>>, %arg4: memref<2x256xf32, #tpu.memory_space<vmem>>) attributes {dimension_semantics = [#tpu.dimension_semantics<parallel>, #tpu.dimension_semantics<parallel>], iteration_bounds = array<i64: 1, 1>, scalar_prefetch = 0 : i64, scratch_operands = 0 : i64, tpu.core_type = #tpu.core_type<tc>, window_params = [{transform_indices = @transform_0, window_bounds = array<i64: 2, 256>}, {transform_indices = @transform_1, window_bounds = array<i64: 1, 256>}, {transform_indices = @transform_2, window_bounds = array<i64: 2, 256>}]} {
    %c0 = arith.constant 0 : index
    %c0_0 = arith.constant 0 : index
    %0 = vector.load %arg2[%c0, %c0_0] : memref<2x256xf32, #tpu.memory_space<vmem>>, vector<2x256xf32>
    %c0_1 = arith.constant 0 : index
    %c0_2 = arith.constant 0 : index
    %1 = vector.load %arg3[%c0_1, %c0_2] : memref<1x256xf32, #tpu.memory_space<vmem>>, vector<1x256xf32>
    %2 = vector.broadcast %1 : vector<1x256xf32> to vector<2x256xf32>
    %3 = arith.addf %0, %2 : vector<2x256xf32>
    %c0_3 = arith.constant 0 : index
    %c0_4 = arith.constant 0 : index
    %4 = vector.load %arg4[%c0_3, %c0_4] : memref<2x256xf32, #tpu.memory_space<vmem>>, vector<2x256xf32>
    tpu.vector_store %arg4[%c0_3, %c0_4], %3 {strides = array<i32>} : memref<2x256xf32, #tpu.memory_space<vmem>>, vector<2x256xf32>,
    return
  }
  func.func @transform_0(%arg0: i32, %arg1: i32) -> (i32, i32) {
    %c0_i32 = arith.constant 0 : i32
    return %arg1, %arg0 : i32, i32
  }
  func.func @transform_1(%arg0: i32, %arg1: i32) -> (i32, i32) {
    %c0_i32 = arith.constant 0 : i32
    %c0_i32_0 = arith.constant 0 : i32
    return %c0_i32, %arg0 : i32, i32
  }
  func.func @transform_2(%arg0: i32, %arg1: i32) -> (i32, i32) {
    %c0_i32 = arith.constant 0 : i32
    return %arg1, %arg0 : i32, i32
  }
}

</mosaic_0001>

<llo_original>
// kernel: tpu_custom_call.1
$region0: #{tpu_custom_call.1}
  #allocation0 [shape = 'u32[]', space=smem, size = 0x4, offset = 0x4, fixed_abs, tag = 'smem constant byte address 0x4 - core index']
  #allocation1 [shape = 'u32[144,128]{1,0:T(1,128)}', space=vmem, size = 0x12000, scoped, tag = 'internal scratch']
  %s0 = inlined_call_operand.hbm [shape: f32[2,256], index: 0, kind: input, shape index: {}]
  %s1 = inlined_call_operand.vmem [shape: f32[1,256], index: 1, kind: input, shape index: {}]
  %s2 = inlined_call_operand.hbm [shape: f32[2,256], index: 2, kind: output, shape index: {}]
  %s3 = sld [smem:[#allocation0]]
  $region22: #{tpu_custom_call.1} parent=0
    _
  %s5 = ssub.s32 1, %s3
  %s6 = scalar_select 0, %s5, %s3
  $region1: #{tpu_custom_call.1} parent=0
    #allocation2 [shape = 'u8[2048]{0}', space=vmem, size = 0x800, scoped, tag = 'input window, operand 0, single buffered']
    #allocation3 [shape = 's32[1]{0}', space=sflag, size = 0x4, scoped, tag = 'scoped memory for tpu_custom_call.1']
    #allocation4 [shape = 's32[1]{0}', space=sflag, size = 0x4, scoped, tag = 'scoped memory for tpu_custom_call.1']
    #allocation5 [shape = 'u8[2048]{0}', space=vmem, size = 0x800, scoped, tag = 'output window, operand 0, single buffered']
    %7 = vsyncpa [#allocation3], 0
    %8 = vsyncpa [#allocation4], 0
    // Predicated region
    $region2: #{tpu_custom_call.1} parent=1 // pred_check
      _
    $region3: #{tpu_custom_call.1} parent=1 // pred_check_branch
      %10 = sbr.rel (0) target = $region5
    $region4: #{tpu_custom_call.1} parent=1 // pred_region
      %s12 = ssub.s32 64, 64
      %13 = vsyncadd [#allocation3], %s12
      %s15 = sshll.u32 [#allocation2], 4
      %s16 = int_to_ptr.vmem [resolvable:$true] %s15
      %18 = dma.hbm_to_vmem [thread:$0]  %s0, 64, %s16, [#allocation3]
    $region5: #{tpu_custom_call.1} parent=1 // pred_fallthru
      _
    // Predicated region
    $region6: #{tpu_custom_call.1} parent=1 // pred_check
      _
    $region7: #{tpu_custom_call.1} parent=1 // pred_check_branch
      %20 = sbr.rel (0) target = $region9
    $region8: #{tpu_custom_call.1} parent=1 // pred_region
      _
    $region9: #{tpu_custom_call.1} parent=1 // pred_fallthru
      _
    // Predicated region
    $region10: #{tpu_custom_call.1} parent=1 // pred_check
      _
    $region11: #{tpu_custom_call.1} parent=1 // pred_check_branch
      %22 = sbr.rel (0) target = $region13
    $region12: #{tpu_custom_call.1} parent=1 // pred_region
      %23 = dma.done [#allocation3], 64
    $region13: #{tpu_custom_call.1} parent=1 // pred_fallthru
      _
    %v24 = vld [vmem:[#allocation2] sm:$0xf]
    %v25 = vld [vmem:[%s1] sm:$0x3]
    %v27 = vlaneseq
    %v28 = vshrl.u32 %v27, 7
    %v29 = vsub.s32 0, %v28
    %v30 = vrot.slane %v25, %v29
    %v31 = vlaneseq
    %v32 = vshrl.u32 %v31, 7
    %v33 = vsub.s32 1, %v32
    %v34 = vrot.slane %v25, %v33
    %v35 = vcombine.low %v30, %v34
    %v37 = vunpack.c.l.s4 1983009808
    %v38 = vunpack.c.0.s8 %v37
    %v39 = vlaneseq
    %v40 = vshrl.u32 %v39, 7
    %v41 = vsub.s32 %v38, %v40
    %v42 = vrot.slane %v35, %v41
    %v44 = vadd.f32 %v24, %v42
    %45 = vst [vmem:[#allocation5] sm:$0xf] %v44
    // Predicated region
    $region14: #{tpu_custom_call.1} parent=1 // pred_check
      _
    $region15: #{tpu_custom_call.1} parent=1 // pred_check_branch
      %47 = sbr.rel (0) target = $region17
    $region16: #{tpu_custom_call.1} parent=1 // pred_region
      %s49 = ssub.s32 64, 64
      %50 = vsyncadd [#allocation4], %s49
      %s52 = sshll.u32 [#allocation5], 4
      %s53 = int_to_ptr.vmem [resolvable:$true] %s52
      %55 = dma.vmem_to_hbm [thread:$0]  %s53, 64, %s2, [#allocation4]
    $region17: #{tpu_custom_call.1} parent=1 // pred_fallthru
      _
    // Predicated region
    $region18: #{tpu_custom_call.1} parent=1 // pred_check
      _
    $region19: #{tpu_custom_call.1} parent=1 // pred_check_branch
      %57 = sbr.rel (0) target = $region21
    $region20: #{tpu_custom_call.1} parent=1 // pred_region
      %58 = dma.done [#allocation4], 64
    $region21: #{tpu_custom_call.1} parent=1 // pred_fallthru
      _
    %59 = vsyncpa [#allocation3], 1
    %60 = vsyncpa [#allocation4], 1

</llo_original>
